<compile_context>
chip_gen: v7x
topology: tpu7x:2x2x1
jax: 0.10.0
libtpu: 0.0.40
codegen_flags: <defaults>
</compile_context>

<pallas_src>
import jax
import jax.numpy as jnp
from jax.experimental import pallas as pl
from jax.experimental.pallas import tpu as pltpu


# ----------------------------------------------------------------------------
# Fused Pallas kernel: both filters + gating + concat for one batch element
# ----------------------------------------------------------------------------
def _cgif_kernel(x_ref, y_ref, wa_ref, ba_ref, alpha_ref, wb_ref, bb_ref, o_ref):
    x = x_ref[0]                                    # (S, D)
    y = y_ref[0]                                    # (S, D)

    # Lane-concat [x | y] -> one (S, 2D) tile so both filters' first Linear
    # run as a single MXU matmul against the block-diagonal weight.
    xy = jnp.concatenate([x, y], axis=-1)           # (S, 2D)
    h = jnp.dot(xy, wa_ref[...],
                preferred_element_type=jnp.float32) + ba_ref[...]   # (S, 2D)

    # PReLU: per-sequence-position alpha (filter1 alphas in cols [:D],
    # filter2 alphas in cols [D:]).
    h = jnp.where(h >= 0, h, alpha_ref[...] * h)

    # Second Linear of both filters, again one block-diagonal matmul.
    z = jnp.dot(h, wb_ref[...],
                preferred_element_type=jnp.float32) + bb_ref[...]   # (S, 2D)

    gate = jax.nn.sigmoid(z)
    # z1 = sigmoid(filter1(x)) * y  |  z2 = sigmoid(filter2(y)) * x
    yx = jnp.concatenate([y, x], axis=-1)           # gating partners [y | x]
    o_ref[0] = (gate * yx).astype(o_ref.dtype)      # lane-dense (S, 2D) store


# ----------------------------------------------------------------------------
# Wrapper: single pallas_call for the whole forward
# ----------------------------------------------------------------------------
def cross_gated_info_filter(fused, x, y):
    B, S, D = x.shape
    C = 2 * D
    return pl.pallas_call(
        _cgif_kernel,
        grid=(B,),
        in_specs=[
            pl.BlockSpec((1, S, D), lambda b: (b, 0, 0)),   # x
            pl.BlockSpec((1, S, D), lambda b: (b, 0, 0)),   # y
            pl.BlockSpec((C, C),    lambda b: (0, 0)),      # Wa (block-diag, resident)
            pl.BlockSpec((1, C),    lambda b: (0, 0)),      # ba
            pl.BlockSpec((S, C),    lambda b: (0, 0)),      # alpha (per seq pos)
            pl.BlockSpec((C, C),    lambda b: (0, 0)),      # Wb (block-diag, resident)
            pl.BlockSpec((1, C),    lambda b: (0, 0)),      # bb
        ],
        out_specs=pl.BlockSpec((1, S, C), lambda b: (b, 0, 0)),
        out_shape=jax.ShapeDtypeStruct((B, S, C), jnp.float32),
        compiler_params=pltpu.CompilerParams(
            dimension_semantics=("parallel",)),             # v7x: 2 TCs share batch
    )(x, y, fused["wa"], fused["ba"], fused["alpha"], fused["wb"], fused["bb"])


# ----------------------------------------------------------------------------
# Parameters (PyTorch-style init) + host-side one-time fusion of the weights
# ----------------------------------------------------------------------------
def init_params(key, in_size, seq_len):
    """Raw per-filter params mirroring nn.Linear / nn.PReLU defaults."""
    def linear(k, fan_in, fan_out):
        kw, kb = jax.random.split(k)
        bound = 1.0 / jnp.sqrt(jnp.float32(fan_in))
        w = jax.random.uniform(kw, (fan_in, fan_out), jnp.float32, -bound, bound)
        b = jax.random.uniform(kb, (fan_out,), jnp.float32, -bound, bound)
        return w, b

    raw = {}
    for name in ("filter1", "filter2"):
        key, k1, k2 = jax.random.split(key, 3)
        w1, b1 = linear(k1, in_size, in_size)
        w2, b2 = linear(k2, in_size, in_size)
        raw[name] = dict(w1=w1, b1=b1, w2=w2, b2=b2,
                         alpha=jnp.full((seq_len,), 0.25, jnp.float32))
    return raw


def fuse_params(raw, in_size, seq_len):
    """Pre-stack both filters block-diagonally so the kernel does 2 GEMMs total."""
    f1, f2 = raw["filter1"], raw["filter2"]
    zeros = jnp.zeros((in_size, in_size), jnp.float32)
    wa = jnp.block([[f1["w1"], zeros], [zeros, f2["w1"]]])          # (2D, 2D)
    wb = jnp.block([[f1["w2"], zeros], [zeros, f2["w2"]]])          # (2D, 2D)
    ba = jnp.concatenate([f1["b1"], f2["b1"]])[None, :]             # (1, 2D)
    bb = jnp.concatenate([f1["b2"], f2["b2"]])[None, :]             # (1, 2D)
    alpha = jnp.concatenate(
        [jnp.broadcast_to(f1["alpha"][:, None], (seq_len, in_size)),
         jnp.broadcast_to(f2["alpha"][:, None], (seq_len, in_size))],
        axis=-1)                                                    # (S, 2D)
    return dict(wa=wa, ba=ba, alpha=alpha, wb=wb, bb=bb)


# ----------------------------------------------------------------------------
# Pure-JAX reference (unfused) for correctness checking
# ----------------------------------------------------------------------------
def reference_forward(raw, x, y):
    def filt(p, t):
        h = jnp.einsum("bsd,de->bse", t, p["w1"],
                       precision=jax.lax.Precision.HIGHEST) + p["b1"]
        h = jnp.where(h >= 0, h, p["alpha"][None, :, None] * h)
        return jnp.einsum("bsd,de->bse", h, p["w2"],
                          precision=jax.lax.Precision.HIGHEST) + p["b2"]

    z1 = jax.nn.sigmoid(filt(raw["filter1"], x)) * y
    z2 = jax.nn.sigmoid(filt(raw["filter2"], y)) * x
    return jnp.concatenate([z1, z2], axis=-1)


# ----------------------------------------------------------------------------
# Example run
# ----------------------------------------------------------------------------
if __name__ == "__main__":
    B = 2              # batch
    S = 8              # config.FLOW_PAD_TRUNC_LENGTH (PReLU channel count)
    D = 64             # in_size  -> output last dim 2D = 128 (one full lane width)

    key = jax.random.PRNGKey(0)
    kx, ky, kp = jax.random.split(key, 3)
    x = jax.random.normal(kx, (B, S, D), jnp.float32)
    y = jax.random.normal(ky, (B, S, D), jnp.float32)

    raw_params = init_params(kp, D, S)
    fused_params = fuse_params(raw_params, D, S)

    out = cross_gated_info_filter(fused_params, x, y)
    out = jax.block_until_ready(out)

    assert out.shape == (B, S, 2 * D), out.shape
    assert bool(jnp.all(jnp.isfinite(out)))

    ref = jax.block_until_ready(reference_forward(raw_params, x, y))
    assert bool(jnp.allclose(out, ref, atol=1e-4, rtol=1e-4)), (
        float(jnp.max(jnp.abs(out - ref))))

    print("KERNEL_OK")
</pallas_src>

<mosaic_0001>
module attributes {stable_mosaic.version = 11 : i64} {
  func.func @_cgif_kernel(%arg0: i32, %arg1: memref<1x8x64xf32, #tpu.memory_space<vmem>>, %arg2: memref<1x8x64xf32, #tpu.memory_space<vmem>>, %arg3: memref<128x128xf32, #tpu.memory_space<vmem>>, %arg4: memref<1x128xf32, #tpu.memory_space<vmem>>, %arg5: memref<8x128xf32, #tpu.memory_space<vmem>>, %arg6: memref<128x128xf32, #tpu.memory_space<vmem>>, %arg7: memref<1x128xf32, #tpu.memory_space<vmem>>, %arg8: memref<1x8x128xf32, #tpu.memory_space<vmem>>) attributes {dimension_semantics = [#tpu.dimension_semantics<parallel>], iteration_bounds = array<i64: 2>, scalar_prefetch = 0 : i64, scratch_operands = 0 : i64, tpu.core_type = #tpu.core_type<tc>, window_params = [{transform_indices = @transform_0, window_bounds = array<i64: 1, 8, 64>}, {transform_indices = @transform_1, window_bounds = array<i64: 1, 8, 64>}, {pipeline_mode = #tpu.pipeline_mode<synchronous>, transform_indices = @transform_2, window_bounds = array<i64: 128, 128>}, {pipeline_mode = #tpu.pipeline_mode<synchronous>, transform_indices = @transform_3, window_bounds = array<i64: 1, 128>}, {pipeline_mode = #tpu.pipeline_mode<synchronous>, transform_indices = @transform_4, window_bounds = array<i64: 8, 128>}, {pipeline_mode = #tpu.pipeline_mode<synchronous>, transform_indices = @transform_5, window_bounds = array<i64: 128, 128>}, {pipeline_mode = #tpu.pipeline_mode<synchronous>, transform_indices = @transform_6, window_bounds = array<i64: 1, 128>}, {transform_indices = @transform_7, window_bounds = array<i64: 1, 8, 128>}]} {
    %c0 = arith.constant 0 : index
    %c0_0 = arith.constant 0 : index
    %c0_1 = arith.constant 0 : index
    %0 = vector.load %arg1[%c0, %c0_0, %c0_1] : memref<1x8x64xf32, #tpu.memory_space<vmem>>, vector<1x8x64xf32>
    %1 = vector.shape_cast %0 : vector<1x8x64xf32> to vector<8x64xf32>
    %c0_2 = arith.constant 0 : index
    %c0_3 = arith.constant 0 : index
    %c0_4 = arith.constant 0 : index
    %2 = vector.load %arg2[%c0_2, %c0_3, %c0_4] : memref<1x8x64xf32, #tpu.memory_space<vmem>>, vector<1x8x64xf32>
    %3 = vector.shape_cast %2 : vector<1x8x64xf32> to vector<8x64xf32>
    %4 = tpu.concatenate %1, %3 in 1 : vector<8x64xf32>, vector<8x64xf32> -> vector<8x128xf32>
    %c0_5 = arith.constant 0 : index
    %c0_6 = arith.constant 0 : index
    %5 = vector.load %arg3[%c0_5, %c0_6] : memref<128x128xf32, #tpu.memory_space<vmem>>, vector<128x128xf32>
    %cst = arith.constant dense<0.000000e+00> : vector<8x128xf32>
    %6 = tpu.matmul %4, %5, %cst {dimension_numbers = #tpu.dot_dimension_numbers<[1], [0], [0], [1], [0, 0, 1, 1], [], []>} : vector<8x128xf32>, vector<128x128xf32>, vector<8x128xf32> -> vector<8x128xf32>
    %c0_7 = arith.constant 0 : index
    %c0_8 = arith.constant 0 : index
    %7 = vector.load %arg4[%c0_7, %c0_8] : memref<1x128xf32, #tpu.memory_space<vmem>>, vector<1x128xf32>
    %8 = vector.broadcast %7 : vector<1x128xf32> to vector<8x128xf32>
    %9 = arith.addf %6, %8 : vector<8x128xf32>
    %cst_9 = arith.constant 0.000000e+00 : f32
    %10 = vector.broadcast %cst_9 : f32 to vector<8x128xf32>
    %11 = arith.cmpf oge, %9, %10 : vector<8x128xf32>
    %c0_10 = arith.constant 0 : index
    %c0_11 = arith.constant 0 : index
    %12 = vector.load %arg5[%c0_10, %c0_11] : memref<8x128xf32, #tpu.memory_space<vmem>>, vector<8x128xf32>
    %13 = arith.mulf %12, %9 : vector<8x128xf32>
    %14 = arith.select %11, %9, %13 : vector<8x128xi1>, vector<8x128xf32>
    %c0_12 = arith.constant 0 : index
    %c0_13 = arith.constant 0 : index
    %15 = vector.load %arg6[%c0_12, %c0_13] : memref<128x128xf32, #tpu.memory_space<vmem>>, vector<128x128xf32>
    %cst_14 = arith.constant dense<0.000000e+00> : vector<8x128xf32>
    %16 = tpu.matmul %14, %15, %cst_14 {dimension_numbers = #tpu.dot_dimension_numbers<[1], [0], [0], [1], [0, 0, 1, 1], [], []>} : vector<8x128xf32>, vector<128x128xf32>, vector<8x128xf32> -> vector<8x128xf32>
    %c0_15 = arith.constant 0 : index
    %c0_16 = arith.constant 0 : index
    %17 = vector.load %arg7[%c0_15, %c0_16] : memref<1x128xf32, #tpu.memory_space<vmem>>, vector<1x128xf32>
    %18 = vector.broadcast %17 : vector<1x128xf32> to vector<8x128xf32>
    %19 = arith.addf %16, %18 : vector<8x128xf32>
    %20 = arith.negf %19 : vector<8x128xf32>
    %21 = math.exp %20 : vector<8x128xf32>
    %cst_17 = arith.constant 1.000000e+00 : f32
    %22 = vector.broadcast %cst_17 : f32 to vector<8x128xf32>
    %23 = arith.addf %22, %21 : vector<8x128xf32>
    %24 = arith.divf %22, %23 : vector<8x128xf32>
    %25 = tpu.concatenate %3, %1 in 1 : vector<8x64xf32>, vector<8x64xf32> -> vector<8x128xf32>
    %26 = arith.mulf %24, %25 : vector<8x128xf32>
    %c0_18 = arith.constant 0 : index
    %c0_19 = arith.constant 0 : index
    %c0_20 = arith.constant 0 : index
    %27 = vector.load %arg8[%c0_18, %c0_19, %c0_20] : memref<1x8x128xf32, #tpu.memory_space<vmem>>, vector<1x8x128xf32>
    %28 = vector.shape_cast %27 : vector<1x8x128xf32> to vector<8x128xf32>
    %29 = vector.shape_cast %26 : vector<8x128xf32> to vector<1x8x128xf32>
    tpu.vector_store %arg8[%c0_18, %c0_19, %c0_20], %29 {strides = array<i32>} : memref<1x8x128xf32, #tpu.memory_space<vmem>>, vector<1x8x128xf32>,
    return
  }
  func.func @transform_0(%arg0: i32) -> (i32, i32, i32) {
    %c0_i32 = arith.constant 0 : i32
    %c0_i32_0 = arith.constant 0 : i32
    %c0_i32_1 = arith.constant 0 : i32
    return %arg0, %c0_i32, %c0_i32_0 : i32, i32, i32
  }
  func.func @transform_1(%arg0: i32) -> (i32, i32, i32) {
    %c0_i32 = arith.constant 0 : i32
    %c0_i32_0 = arith.constant 0 : i32
    %c0_i32_1 = arith.constant 0 : i32
    return %arg0, %c0_i32, %c0_i32_0 : i32, i32, i32
  }
  func.func @transform_2(%arg0: i32) -> (i32, i32) {
    %c0_i32 = arith.constant 0 : i32
    %c0_i32_0 = arith.constant 0 : i32
    %c0_i32_1 = arith.constant 0 : i32
    return %c0_i32, %c0_i32_0 : i32, i32
  }
  func.func @transform_3(%arg0: i32) -> (i32, i32) {
    %c0_i32 = arith.constant 0 : i32
    %c0_i32_0 = arith.constant 0 : i32
    %c0_i32_1 = arith.constant 0 : i32
    return %c0_i32, %c0_i32_0 : i32, i32
  }
  func.func @transform_4(%arg0: i32) -> (i32, i32) {
    %c0_i32 = arith.constant 0 : i32
    %c0_i32_0 = arith.constant 0 : i32
    %c0_i32_1 = arith.constant 0 : i32
    return %c0_i32, %c0_i32_0 : i32, i32
  }
  func.func @transform_5(%arg0: i32) -> (i32, i32) {
    %c0_i32 = arith.constant 0 : i32
    %c0_i32_0 = arith.constant 0 : i32
    %c0_i32_1 = arith.constant 0 : i32
    return %c0_i32, %c0_i32_0 : i32, i32
  }
  func.func @transform_6(%arg0: i32) -> (i32, i32) {
    %c0_i32 = arith.constant 0 : i32
    %c0_i32_0 = arith.constant 0 : i32
    %c0_i32_1 = arith.constant 0 : i32
    return %c0_i32, %c0_i32_0 : i32, i32
  }
  func.func @transform_7(%arg0: i32) -> (i32, i32, i32) {
    %c0_i32 = arith.constant 0 : i32
    %c0_i32_0 = arith.constant 0 : i32
    %c0_i32_1 = arith.constant 0 : i32
    return %arg0, %c0_i32, %c0_i32_0 : i32, i32, i32
  }
}

</mosaic_0001>

<llo_original>
// kernel: tpu_custom_call.1
$region0: #{tpu_custom_call.1}
  #allocation0 [shape = 'u32[]', space=smem, size = 0x4, offset = 0x4, fixed_abs, tag = 'smem constant byte address 0x4 - core index']
  #allocation1 [shape = 'u32[144,128]{1,0:T(1,128)}', space=vmem, size = 0x12000, scoped, tag = 'internal scratch']
  %s0 = inlined_call_operand.hbm [shape: f32[2,8,64], index: 0, kind: input, shape index: {}]
  %s1 = inlined_call_operand.hbm [shape: f32[2,8,64], index: 1, kind: input, shape index: {}]
  %s2 = inlined_call_operand.hbm [shape: f32[128,128], index: 2, kind: input, shape index: {}]
  %s3 = inlined_call_operand.vmem [shape: f32[1,128], index: 3, kind: input, shape index: {}]
  %s4 = inlined_call_operand.vmem [shape: f32[8,128], index: 4, kind: input, shape index: {}]
  %s5 = inlined_call_operand.hbm [shape: f32[128,128], index: 5, kind: input, shape index: {}]
  %s6 = inlined_call_operand.vmem [shape: f32[1,128], index: 6, kind: input, shape index: {}]
  %s7 = inlined_call_operand.hbm [shape: f32[2,8,128], index: 7, kind: output, shape index: {}]
  %s8 = sld [smem:[#allocation0]]
  $region77: #{tpu_custom_call.1} parent=0
    _
  %s10 = ssub.s32 1, %s8
  %s11 = scalar_select 0, %s10, %s8
  $region1: #{tpu_custom_call.1} parent=0
    #allocation2 [shape = 'u8[8192]{0}', space=vmem, size = 0x2000, scoped, tag = 'input window, operand 0']
    #allocation3 [shape = 's32[2]{0}', space=sflag, size = 0x8, scoped, tag = 'scoped memory for tpu_custom_call.1']
    #allocation4 [shape = 's32[2]{0}', space=sflag, size = 0x8, scoped, tag = 'scoped memory for tpu_custom_call.1']
    #allocation5 [shape = 'u8[8192]{0}', space=vmem, size = 0x2000, scoped, tag = 'input window, operand 1']
    #allocation6 [shape = 's32[2]{0}', space=sflag, size = 0x8, scoped, tag = 'scoped memory for tpu_custom_call.1']
    #allocation7 [shape = 'u8[65536]{0}', space=vmem, size = 0x10000, scoped, tag = 'input window, operand 2, single buffered']
    #allocation8 [shape = 'u8[65536]{0}', space=vmem, size = 0x10000, scoped, tag = 'input window, operand 5, single buffered']
    #allocation9 [shape = 's32[1]{0}', space=sflag, size = 0x4, scoped, tag = 'scoped memory for tpu_custom_call.1']
    #allocation10 [shape = 'u8[8192]{0}', space=vmem, size = 0x2000, scoped, tag = 'output window, operand 0']
    %12 = vsyncpa [#allocation3], 0
    %s13 = scalar_lea.sflag [#allocation3], 1
    %14 = vsyncpa %s13, 0
    %15 = vsyncpa [#allocation6], 0
    %s16 = scalar_lea.sflag [#allocation6], 1
    %17 = vsyncpa %s16, 0
    %18 = vsyncpa [#allocation9], 0
    %19 = vsyncpa [#allocation4], 0
    %s20 = scalar_lea.sflag [#allocation4], 1
    %21 = vsyncpa %s20, 0
    loop: start=0, step=1, limit=4
    $region2: #{tpu_custom_call.1} parent=1 // loop_pre_header
      _
    $region3: #{tpu_custom_call.1} parent=1 // loop_header
      %s23 = sphi 0, %s27
      %p24 = scmp.ge.s32.totalorder %s23, 4
      %s33 = sphi 0, %s35
      %s36 = sphi 0, %s33
      %s37 = sphi 0, %s36
      %s53 = sphi 0, %s37
      %s59 = sphi 0, %s61
      %s62 = sphi 0, %s59
      %s63 = sphi 0, %s62
      %s79 = sphi 0, %s63
      %s83 = sphi 0, %s83
      %s85 = sphi 0, %s83
      %s86 = sphi 0, %s85
      %s100 = sphi 0, %s86
      %s104 = sphi 0, %s104
      %s106 = sphi 0, %s104
      %s107 = sphi 0, %s106
      %s121 = sphi 0, %s107
      %s125 = sphi 0, %s125
      %s127 = sphi 0, %s125
      %s128 = sphi 0, %s127
      %s142 = sphi 0, %s128
      %s146 = sphi 0, %s146
      %s148 = sphi 0, %s146
      %s149 = sphi 0, %s148
      %s163 = sphi 0, %s149
      %s167 = sphi 0, %s167
      %s169 = sphi 0, %s167
      %s170 = sphi 0, %s169
      %s184 = sphi 0, %s170
      %s190 = sphi 0, %s192
      %s193 = sphi 0, %s190
      %s194 = sphi 0, %s193
      %s210 = sphi 0, %s194
    $region4: #{tpu_custom_call.1} parent=1 // loop_header_branch
      %26 = sbr.rel (%p24) target = $region8
    $region5: #{tpu_custom_call.1} parent=1 // loop_body
      %s28 = ssub.s32 %s23, 1
      %s29 = ssub.s32 %s23, 2
      %s30 = sadd.s32 %s23, 1
      %s31 = ssub.s32 %s23, %s30
      %p32 = scmp.eq.s32.totalorder %s31, 0
      %s34 = sadd.s32 %s33, 1
      %s35 = scalar_select %p32, %s33, %s34
      %p38 = pneg %p32
      %p39 = scmp.eq.s32.totalorder %s23, 1
      %p40 = por %p38, %p39
      %p41 = scmp.ne.s32.totalorder %s33, %s36
      %p42 = scmp.eq.s32.totalorder %s23, 0
      %p43 = por %p41, %p42
      %p44 = scmp.ne.s32.totalorder %s33, %s36
      %p45 = scmp.eq.s32.totalorder %s28, 1
      %p46 = por %p44, %p45
      %p47 = scmp.ne.s32.totalorder %s36, %s37
      %p48 = scmp.eq.s32.totalorder %s28, 0
      %p49 = por %p47, %p48
      %p50 = scmp.ne.s32.totalorder %s36, %s37
      %p51 = scmp.eq.s32.totalorder %s29, 1
      %p52 = por %p50, %p51
      %p54 = scmp.ne.s32.totalorder %s37, %s53
      %p55 = scmp.eq.s32.totalorder %s29, 0
      %p56 = por %p54, %p55
      %s57 = ssub.s32 %s23, %s30
      %p58 = scmp.eq.s32.totalorder %s57, 0
      %s60 = sadd.s32 %s59, 1
      %s61 = scalar_select %p58, %s59, %s60
      %p64 = pneg %p58
      %p65 = scmp.eq.s32.totalorder %s23, 1
      %p66 = por %p64, %p65
      %p67 = scmp.ne.s32.totalorder %s59, %s62
      %p68 = scmp.eq.s32.totalorder %s23, 0
      %p69 = por %p67, %p68
      %p70 = scmp.ne.s32.totalorder %s59, %s62
      %p71 = scmp.eq.s32.totalorder %s28, 1
      %p72 = por %p70, %p71
      %p73 = scmp.ne.s32.totalorder %s62, %s63
      %p74 = scmp.eq.s32.totalorder %s28, 0
      %p75 = por %p73, %p74
      %p76 = scmp.ne.s32.totalorder %s62, %s63
      %p77 = scmp.eq.s32.totalorder %s29, 1
      %p78 = por %p76, %p77
      %p80 = scmp.ne.s32.totalorder %s63, %s79
      %p81 = scmp.eq.s32.totalorder %s29, 0
      %p82 = por %p80, %p81
      %s84 = sadd.s32 %s83, 1
      %p87 = scmp.eq.s32.totalorder %s23, 1
      %p88 = scmp.ne.s32.totalorder %s83, %s85
      %p89 = scmp.eq.s32.totalorder %s23, 0
      %p90 = por %p88, %p89
      %p91 = scmp.ne.s32.totalorder %s83, %s85
      %p92 = scmp.eq.s32.totalorder %s28, 1
      %p93 = por %p91, %p92
      %p94 = scmp.ne.s32.totalorder %s85, %s86
      %p95 = scmp.eq.s32.totalorder %s28, 0
      %p96 = por %p94, %p95
      %p97 = scmp.ne.s32.totalorder %s85, %s86
      %p98 = scmp.eq.s32.totalorder %s29, 1
      %p99 = por %p97, %p98
      %p101 = scmp.ne.s32.totalorder %s86, %s100
      %p102 = scmp.eq.s32.totalorder %s29, 0
      %p103 = por %p101, %p102
      %s105 = sadd.s32 %s104, 1
      %p108 = scmp.eq.s32.totalorder %s23, 1
      %p109 = scmp.ne.s32.totalorder %s104, %s106
      %p110 = scmp.eq.s32.totalorder %s23, 0
      %p111 = por %p109, %p110
      %p112 = scmp.ne.s32.totalorder %s104, %s106
      %p113 = scmp.eq.s32.totalorder %s28, 1
      %p114 = por %p112, %p113
      %p115 = scmp.ne.s32.totalorder %s106, %s107
      %p116 = scmp.eq.s32.totalorder %s28, 0
      %p117 = por %p115, %p116
      %p118 = scmp.ne.s32.totalorder %s106, %s107
      %p119 = scmp.eq.s32.totalorder %s29, 1
      %p120 = por %p118, %p119
      %p122 = scmp.ne.s32.totalorder %s107, %s121
      %p123 = scmp.eq.s32.totalorder %s29, 0
      %p124 = por %p122, %p123
      %s126 = sadd.s32 %s125, 1
      %p129 = scmp.eq.s32.totalorder %s23, 1
      %p130 = scmp.ne.s32.totalorder %s125, %s127
      %p131 = scmp.eq.s32.totalorder %s23, 0
      %p132 = por %p130, %p131
      %p133 = scmp.ne.s32.totalorder %s125, %s127
      %p134 = scmp.eq.s32.totalorder %s28, 1
      %p135 = por %p133, %p134
      %p136 = scmp.ne.s32.totalorder %s127, %s128
      %p137 = scmp.eq.s32.totalorder %s28, 0
      %p138 = por %p136, %p137
      %p139 = scmp.ne.s32.totalorder %s127, %s128
      %p140 = scmp.eq.s32.totalorder %s29, 1
      %p141 = por %p139, %p140
      %p143 = scmp.ne.s32.totalorder %s128, %s142
      %p144 = scmp.eq.s32.totalorder %s29, 0
      %p145 = por %p143, %p144
      %s147 = sadd.s32 %s146, 1
      %p150 = scmp.eq.s32.totalorder %s23, 1
      %p151 = scmp.ne.s32.totalorder %s146, %s148
      %p152 = scmp.eq.s32.totalorder %s23, 0
      %p153 = por %p151, %p152
      %p154 = scmp.ne.s32.totalorder %s146, %s148
      %p155 = scmp.eq.s32.totalorder %s28, 1
      %p156 = por %p154, %p155
      %p157 = scmp.ne.s32.totalorder %s148, %s149
      %p158 = scmp.eq.s32.totalorder %s28, 0
      %p159 = por %p157, %p158
      %p160 = scmp.ne.s32.totalorder %s148, %s149
      %p161 = scmp.eq.s32.totalorder %s29, 1
      %p162 = por %p160, %p161
      %p164 = scmp.ne.s32.totalorder %s149, %s163
      %p165 = scmp.eq.s32.totalorder %s29, 0
      %p166 = por %p164, %p165
      %s168 = sadd.s32 %s167, 1
      %p171 = scmp.eq.s32.totalorder %s23, 1
      %p172 = scmp.ne.s32.totalorder %s167, %s169
      %p173 = scmp.eq.s32.totalorder %s23, 0
      %p174 = por %p172, %p173
      %p175 = scmp.ne.s32.totalorder %s167, %s169
      %p176 = scmp.eq.s32.totalorder %s28, 1
      %p177 = por %p175, %p176
      %p178 = scmp.ne.s32.totalorder %s169, %s170
      %p179 = scmp.eq.s32.totalorder %s28, 0
      %p180 = por %p178, %p179
      %p181 = scmp.ne.s32.totalorder %s169, %s170
      %p182 = scmp.eq.s32.totalorder %s29, 1
      %p183 = por %p181, %p182
      %p185 = scmp.ne.s32.totalorder %s170, %s184
      %p186 = scmp.eq.s32.totalorder %s29, 0
      %p187 = por %p185, %p186
      %s188 = ssub.s32 %s23, %s30
      %p189 = scmp.eq.s32.totalorder %s188, 0
      %s191 = sadd.s32 %s190, 1
      %s192 = scalar_select %p189, %s190, %s191
      %p195 = pneg %p189
      %p196 = scmp.eq.s32.totalorder %s23, 1
      %p197 = por %p195, %p196
      %p198 = scmp.ne.s32.totalorder %s190, %s193
      %p199 = scmp.eq.s32.totalorder %s23, 0
      %p200 = por %p198, %p199
      %p201 = scmp.ne.s32.totalorder %s190, %s193
      %p202 = scmp.eq.s32.totalorder %s28, 1
      %p203 = por %p201, %p202
      %p204 = scmp.ne.s32.totalorder %s193, %s194
      %p205 = scmp.eq.s32.totalorder %s28, 0
      %p206 = por %p204, %p205
      %p207 = scmp.ne.s32.totalorder %s193, %s194
      %p208 = scmp.eq.s32.totalorder %s29, 1
      %p209 = por %p207, %p208
      %p211 = scmp.ne.s32.totalorder %s194, %s210
      %p212 = scmp.eq.s32.totalorder %s29, 0
      %p213 = por %p211, %p212
      %p214 = scmp.le.s32.totalorder 1, %s23
      %p215 = scmp.lt.s32.totalorder %s23, 3
      %p216 = pnand %p214, %p215
      %p217 = pneg %p216
      // Predicated region
      $region9: #{tpu_custom_call.1} parent=5 // pred_check
        _
      $region10: #{tpu_custom_call.1} parent=5 // pred_check_branch
        %219 = sbr.rel (%p216) target = $region12
      $region11: #{tpu_custom_call.1} parent=5 // pred_region
        %s220 = ssub.s32 %s23, 1
        // Predicated region
        $region13: #{tpu_custom_call.1} parent=11 // pred_check
          %p221 = pneg %p96
        $region14: #{tpu_custom_call.1} parent=11 // pred_check_branch
          %223 = sbr.rel (%p221) target = $region16
        $region15: #{tpu_custom_call.1} parent=11 // pred_region
          %s225 = ssub.s32 2048, 2048
          %226 = vsyncadd [#allocation6], %s225
          %s227 = sshll.u32 [#allocation7], 4
          %s228 = int_to_ptr.vmem [resolvable:$true] %s227
          %233 = dma.hbm_to_vmem [thread:$0]  %s2, 2048, %s228, [#allocation6], 128, 128, 8
        $region16: #{tpu_custom_call.1} parent=11 // pred_fallthru
          _
        // Predicated region
        $region17: #{tpu_custom_call.1} parent=11 // pred_check
          %p234 = pneg %p117
        $region18: #{tpu_custom_call.1} parent=11 // pred_check_branch
          %236 = sbr.rel (%p234) target = $region20
        $region19: #{tpu_custom_call.1} parent=11 // pred_region
          _
        $region20: #{tpu_custom_call.1} parent=11 // pred_fallthru
          _
        // Predicated region
        $region21: #{tpu_custom_call.1} parent=11 // pred_check
          %p237 = pneg %p138
        $region22: #{tpu_custom_call.1} parent=11 // pred_check_branch
          %239 = sbr.rel (%p237) target = $region24
        $region23: #{tpu_custom_call.1} parent=11 // pred_region
          _
        $region24: #{tpu_custom_call.1} parent=11 // pred_fallthru
          _
        // Predicated region
        $region25: #{tpu_custom_call.1} parent=11 // pred_check
          %p240 = pneg %p159
        $region26: #{tpu_custom_call.1} parent=11 // pred_check_branch
          %242 = sbr.rel (%p240) target = $region28
        $region27: #{tpu_custom_call.1} parent=11 // pred_region
          %s244 = ssub.s32 2048, 2048
          %245 = vsyncadd [#allocation9], %s244
          %s246 = sshll.u32 [#allocation8], 4
          %s247 = int_to_ptr.vmem [resolvable:$true] %s246
          %252 = dma.hbm_to_vmem [thread:$0]  %s5, 2048, %s247, [#allocation9], 128, 128, 8
        $region28: #{tpu_custom_call.1} parent=11 // pred_fallthru
          _
        // Predicated region
        $region29: #{tpu_custom_call.1} parent=11 // pred_check
          %p253 = pneg %p180
        $region30: #{tpu_custom_call.1} parent=11 // pred_check_branch
          %255 = sbr.rel (%p253) target = $region32
        $region31: #{tpu_custom_call.1} parent=11 // pred_region
          _
        $region32: #{tpu_custom_call.1} parent=11 // pred_fallthru
          _
      $region12: #{tpu_custom_call.1} parent=5 // pred_fallthru
        _
      %p256 = scmp.lt.s32.totalorder %s23, 2
      // Predicated region
      $region33: #{tpu_custom_call.1} parent=5 // pred_check
        %p257 = pneg %p256
      $region34: #{tpu_custom_call.1} parent=5 // pred_check_branch
        %259 = sbr.rel (%p257) target = $region36
      $region35: #{tpu_custom_call.1} parent=5 // pred_region
        // Predicated region
        $region37: #{tpu_custom_call.1} parent=35 // pred_check
          %p260 = pneg %p43
        $region38: #{tpu_custom_call.1} parent=35 // pred_check_branch
          %262 = sbr.rel (%p260) target = $region40
        $region39: #{tpu_custom_call.1} parent=35 // pred_region
          %s263 = sand.u32 %s33, 1
          %s264 = scalar_lea.sflag [#allocation3], %s263
          %s265 = sand.u32 %s33, 1
          %s266 = smul.addr %s265, 8
          %s267 = scalar_lea.vmem [#allocation2], %s266
          %s269 = ssub.s32 128, 128
          %270 = vsyncadd %s264, %s269
          %s271 = smul.addr %s23, 128
          %s272 = scalar_lea.hbm %s0, %s271
          %s274 = sshll.u32 %s267, 4
          %s275 = int_to_ptr.vmem [resolvable:$true] %s274
          %277 = dma.hbm_to_vmem [thread:$0]  %s272, 128, %s275, %s264
        $region40: #{tpu_custom_call.1} parent=35 // pred_fallthru
          _
        // Predicated region
        $region41: #{tpu_custom_call.1} parent=35 // pred_check
          %p278 = pneg %p69
        $region42: #{tpu_custom_call.1} parent=35 // pred_check_branch
          %280 = sbr.rel (%p278) target = $region44
        $region43: #{tpu_custom_call.1} parent=35 // pred_region
          %s281 = sand.u32 %s23, 1
          %s282 = scalar_lea.sflag [#allocation6], %s281
          %s283 = sand.u32 %s59, 1
          %s284 = smul.addr %s283, 8
          %s285 = scalar_lea.vmem [#allocation5], %s284
          %s287 = ssub.s32 128, 128
          %288 = vsyncadd %s282, %s287
          %s289 = smul.addr %s23, 128
          %s290 = scalar_lea.hbm %s1, %s289
          %s292 = sshll.u32 %s285, 4
          %s293 = int_to_ptr.vmem [resolvable:$true] %s292
          %295 = dma.hbm_to_vmem [thread:$0]  %s290, 128, %s293, %s282
        $region44: #{tpu_custom_call.1} parent=35 // pred_fallthru
          _
      $region36: #{tpu_custom_call.1} parent=5 // pred_fallthru
        _
      %p296 = scmp.le.s32.totalorder 1, %s23
      %p297 = scmp.lt.s32.totalorder %s23, 3
      %p298 = pnand %p296, %p297
      %p299 = pneg %p298
      // Predicated region
      $region45: #{tpu_custom_call.1} parent=5 // pred_check
        _
      $region46: #{tpu_custom_call.1} parent=5 // pred_check_branch
        %301 = sbr.rel (%p298) target = $region48
      $region47: #{tpu_custom_call.1} parent=5 // pred_region
        %s302 = ssub.s32 %s23, 1
        %s303 = sand.u32 %s36, 1
        %s304 = scalar_lea.sflag [#allocation3], %s303
        %s305 = sand.u32 %s36, 1
        %s306 = smul.addr %s305, 8
        %s307 = scalar_lea.vmem [#allocation2], %s306
        // Predicated region
        $region49: #{tpu_custom_call.1} parent=47 // pred_check
          %p308 = pneg %p49
        $region50: #{tpu_custom_call.1} parent=47 // pred_check_branch
          %310 = sbr.rel (%p308) target = $region52
        $region51: #{tpu_custom_call.1} parent=47 // pred_region
          %311 = dma.done %s304, 128
        $region52: #{tpu_custom_call.1} parent=47 // pred_fallthru
          _
        %s312 = sand.u32 %s28, 1
        %s313 = scalar_lea.sflag [#allocation6], %s312
        %s314 = sand.u32 %s62, 1
        %s315 = smul.addr %s314, 8
        %s316 = scalar_lea.vmem [#allocation5], %s315
        // Predicated region
        $region53: #{tpu_custom_call.1} parent=47 // pred_check
          %p317 = pneg %p75
        $region54: #{tpu_custom_call.1} parent=47 // pred_check_branch
          %319 = sbr.rel (%p317) target = $region56
        $region55: #{tpu_custom_call.1} parent=47 // pred_region
          %320 = dma.done %s313, 128
        $region56: #{tpu_custom_call.1} parent=47 // pred_fallthru
          _
        // Predicated region
        $region57: #{tpu_custom_call.1} parent=47 // pred_check
          %p321 = pneg %p96
        $region58: #{tpu_custom_call.1} parent=47 // pred_check_branch
          %323 = sbr.rel (%p321) target = $region60
        $region59: #{tpu_custom_call.1} parent=47 // pred_region
          %324 = dma.done [#allocation6], 2048
        $region60: #{tpu_custom_call.1} parent=47 // pred_fallthru
          _
        // Predicated region
        $region61: #{tpu_custom_call.1} parent=47 // pred_check
          %p325 = pneg %p159
        $region62: #{tpu_custom_call.1} parent=47 // pred_check_branch
          %327 = sbr.rel (%p325) target = $region64
        $region63: #{tpu_custom_call.1} parent=47 // pred_region
          %328 = dma.done [#allocation9], 2048
        $region64: #{tpu_custom_call.1} parent=47 // pred_fallthru
          _
        %s329 = sand.u32 %s36, 1
        %s330 = scalar_lea.sflag [#allocation3], %s329
        %s331 = sand.u32 %s36, 1
        %s332 = smul.addr %s331, 8
        %s333 = scalar_lea.vmem [#allocation2], %s332
        %p334 = pneg %p49
        %p335 = pneg %p46
        %s336 = sand.u32 %s28, 1
        %s337 = scalar_lea.sflag [#allocation6], %s336
        %s338 = sand.u32 %s62, 1
        %s339 = smul.addr %s338, 8
        %s340 = scalar_lea.vmem [#allocation5], %s339
        %p341 = pneg %p75
        %p342 = pneg %p72
        %p343 = pneg %p96
        %p344 = pneg %p93
        %p345 = pneg %p117
        %p346 = pneg %p114
        %p347 = pneg %p138
        %p348 = pneg %p135
        %p349 = pneg %p159
        %p350 = pneg %p156
        %p351 = pneg %p180
        %p352 = pneg %p177
        %p353 = pneg %p206
        %p354 = pneg %p203
        %s355 = sand.u32 %s193, 1
        %s356 = scalar_lea.sflag [#allocation4], %s355
        %s357 = sand.u32 %s193, 1
        %s358 = smul.addr %s357, 8
        %s359 = scalar_lea.vmem [#allocation10], %s358
        %v360 = vld [vmem:[%s307] sm:$0xff]
        %v361 = vld [vmem:[%s316] sm:$0xff]
        %363 = vrot.lane.b32.xlu0 %v361, 64
        %v364 = vpop.permute.xlu0 %363
        %vm366 = vcmask 523264
        %v367 = vsel %vm366, %v360, %v364
        %v368 = vld [vmem:[#allocation7] sm:$0xff]
        %v369 = vld [vmem:[#allocation7 + $0x8] sm:$0xff]
        %v370 = vld [vmem:[#allocation7 + $0x10] sm:$0xff]
        %v371 = vld [vmem:[#allocation7 + $0x18] sm:$0xff]
        %v372 = vld [vmem:[#allocation7 + $0x20] sm:$0xff]
        %v373 = vld [vmem:[#allocation7 + $0x28] sm:$0xff]
        %v374 = vld [vmem:[#allocation7 + $0x30] sm:$0xff]
        %v375 = vld [vmem:[#allocation7 + $0x38] sm:$0xff]
        %v376 = vld [vmem:[#allocation7 + $0x40] sm:$0xff]
        %v377 = vld [vmem:[#allocation7 + $0x48] sm:$0xff]
        %v378 = vld [vmem:[#allocation7 + $0x50] sm:$0xff]
        %v379 = vld [vmem:[#allocation7 + $0x58] sm:$0xff]
        %v380 = vld [vmem:[#allocation7 + $0x60] sm:$0xff]
        %v381 = vld [vmem:[#allocation7 + $0x68] sm:$0xff]
        %v382 = vld [vmem:[#allocation7 + $0x70] sm:$0xff]
        %v383 = vld [vmem:[#allocation7 + $0x78] sm:$0xff]
        %v384 = vld [vmem:[%s3] sm:$0x1]
        %v386 = vlaneseq
        %v387 = vshrl.u32 %v386, 7
        %v388 = vsub.s32 0, %v387
        %v389 = vrot.slane %v384, %v388
        %391 = vmatprep.subr.mxu0 0.0
        %392 = vmatpush1.msra.mxu0 %v368
        %393 = vmatprep.subr.mxu0 0.0
        %394 = vmatpush1.msra.mxu0 %v369
        %395 = vmatprep.subr.mxu0 0.0
        %396 = vmatpush1.msra.mxu0 %v370
        %397 = vmatprep.subr.mxu0 0.0
        %398 = vmatpush1.msra.mxu0 %v371
        %399 = vmatprep.subr.mxu0 0.0
        %400 = vmatpush1.msra.mxu0 %v372
        %401 = vmatprep.subr.mxu0 0.0
        %402 = vmatpush1.msra.mxu0 %v373
        %403 = vmatprep.subr.mxu0 0.0
        %404 = vmatpush1.msra.mxu0 %v374
        %405 = vmatprep.subr.mxu0 0.0
        %406 = vmatpush1.msra.mxu0 %v375
        %407 = vmatprep.subr.mxu0 0.0
        %408 = vmatpush1.msra.mxu0 %v376
        %409 = vmatprep.subr.mxu0 0.0
        %410 = vmatpush1.msra.mxu0 %v377
        %411 = vmatprep.subr.mxu0 0.0
        %412 = vmatpush1.msra.mxu0 %v378
        %413 = vmatprep.subr.mxu0 0.0
        %414 = vmatpush1.msra.mxu0 %v379
        %415 = vmatprep.subr.mxu0 0.0
        %416 = vmatpush1.msra.mxu0 %v380
        %417 = vmatprep.subr.mxu0 0.0
        %418 = vmatpush1.msra.mxu0 %v381
        %419 = vmatprep.subr.mxu0 0.0
        %420 = vmatpush1.msra.mxu0 %v382
        %421 = vmatprep.subr.mxu0 0.0
        %422 = vmatpush1.msra.mxu0 %v383
        %423 = vmatprep.subr.mxu0 0.0
        %424 = vmatpush1.msra.mxu0 0.0
        %425 = vmatprep.subr.mxu0 0.0
        %426 = vmatpush1.msra.mxu0 0.0
        %427 = vmatprep.subr.mxu0 0.0
        %428 = vmatpush1.msra.mxu0 0.0
        %429 = vmatprep.subr.mxu0 0.0
        %430 = vmatpush1.msra.mxu0 0.0
        %431 = vmatprep.subr.mxu0 0.0
        %432 = vmatpush1.msra.mxu0 0.0
        %433 = vmatprep.subr.mxu0 0.0
        %434 = vmatpush1.msra.mxu0 0.0
        %435 = vmatprep.subr.mxu0 0.0
        %436 = vmatpush1.msra.mxu0 0.0
        %437 = vmatprep.subr.mxu0 0.0
        %438 = vmatpush1.msra.mxu0 0.0
        %439 = vmatprep.subr.mxu0 0.0
        %440 = vmatpush1.msra.mxu0 0.0
        %441 = vmatprep.subr.mxu0 0.0
        %442 = vmatpush1.msra.mxu0 0.0
        %443 = vmatprep.subr.mxu0 0.0
        %444 = vmatpush1.msra.mxu0 0.0
        %445 = vmatprep.subr.mxu0 0.0
        %446 = vmatpush1.msra.mxu0 0.0
        %447 = vmatprep.subr.mxu0 0.0
        %448 = vmatpush1.msra.mxu0 0.0
        %449 = vmatprep.subr.mxu0 0.0
        %450 = vmatpush1.msra.mxu0 0.0
        %451 = vmatprep.subr.mxu0 0.0
        %452 = vmatpush1.msra.mxu0 0.0
        %453 = vmatprep.subr.mxu0 0.0
        %454 = vmatpush1.msra.mxu0 0.0
        %455 = vmatprep.mubr.f32.mxu0 0.0
        %456 = vmatmul.mubr.f32.gmra.mrb[0].mxu0 %v367
        %v457 = vpop.f32.mrb[0].mxu0
        %v458 = vadd.f32 %v389, %v457
        %v459 = vpop.f32.mrb[0].mxu0
        %460 = vdwg.mxu0
        %vm461 = vcmp.ge.f32.partialorder %v458, 0.0
        %v462 = vld [vmem:[%s4] sm:$0xff]
        %v463 = vmul.f32 %v462, %v458
        %v464 = vsel %vm461, %v458, %v463
        %v465 = vld [vmem:[#allocation8] sm:$0xff]
        %v466 = vld [vmem:[#allocation8 + $0x8] sm:$0xff]
        %v467 = vld [vmem:[#allocation8 + $0x10] sm:$0xff]
        %v468 = vld [vmem:[#allocation8 + $0x18] sm:$0xff]
        %v469 = vld [vmem:[#allocation8 + $0x20] sm:$0xff]
        %v470 = vld [vmem:[#allocation8 + $0x28] sm:$0xff]
        %v471 = vld [vmem:[#allocation8 + $0x30] sm:$0xff]
        %v472 = vld [vmem:[#allocation8 + $0x38] sm:$0xff]
        %v473 = vld [vmem:[#allocation8 + $0x40] sm:$0xff]
        %v474 = vld [vmem:[#allocation8 + $0x48] sm:$0xff]
        %v475 = vld [vmem:[#allocation8 + $0x50] sm:$0xff]
        %v476 = vld [vmem:[#allocation8 + $0x58] sm:$0xff]
        %v477 = vld [vmem:[#allocation8 + $0x60] sm:$0xff]
        %v478 = vld [vmem:[#allocation8 + $0x68] sm:$0xff]
        %v479 = vld [vmem:[#allocation8 + $0x70] sm:$0xff]
        %v480 = vld [vmem:[#allocation8 + $0x78] sm:$0xff]
        %v481 = vld [vmem:[%s6] sm:$0x1]
        %v483 = vlaneseq
        %v484 = vshrl.u32 %v483, 7
        %v485 = vsub.s32 0, %v484
        %v486 = vrot.slane %v481, %v485
        %488 = vmatprep.subr.mxu0 0.0
        %489 = vmatpush1.msra.mxu0 %v465
        %490 = vmatprep.subr.mxu0 0.0
        %491 = vmatpush1.msra.mxu0 %v466
        %492 = vmatprep.subr.mxu0 0.0
        %493 = vmatpush1.msra.mxu0 %v467
        %494 = vmatprep.subr.mxu0 0.0
        %495 = vmatpush1.msra.mxu0 %v468
        %496 = vmatprep.subr.mxu0 0.0
        %497 = vmatpush1.msra.mxu0 %v469
        %498 = vmatprep.subr.mxu0 0.0
        %499 = vmatpush1.msra.mxu0 %v470
        %500 = vmatprep.subr.mxu0 0.0
        %501 = vmatpush1.msra.mxu0 %v471
        %502 = vmatprep.subr.mxu0 0.0
        %503 = vmatpush1.msra.mxu0 %v472
        %504 = vmatprep.subr.mxu0 0.0
        %505 = vmatpush1.msra.mxu0 %v473
        %506 = vmatprep.subr.mxu0 0.0
        %507 = vmatpush1.msra.mxu0 %v474
        %508 = vmatprep.subr.mxu0 0.0
        %509 = vmatpush1.msra.mxu0 %v475
        %510 = vmatprep.subr.mxu0 0.0
        %511 = vmatpush1.msra.mxu0 %v476
        %512 = vmatprep.subr.mxu0 0.0
        %513 = vmatpush1.msra.mxu0 %v477
        %514 = vmatprep.subr.mxu0 0.0
        %515 = vmatpush1.msra.mxu0 %v478
        %516 = vmatprep.subr.mxu0 0.0
        %517 = vmatpush1.msra.mxu0 %v479
        %518 = vmatprep.subr.mxu0 0.0
        %519 = vmatpush1.msra.mxu0 %v480
        %520 = vmatprep.subr.mxu0 0.0
        %521 = vmatpush1.msra.mxu0 0.0
        %522 = vmatprep.subr.mxu0 0.0
        %523 = vmatpush1.msra.mxu0 0.0
        %524 = vmatprep.subr.mxu0 0.0
        %525 = vmatpush1.msra.mxu0 0.0
        %526 = vmatprep.subr.mxu0 0.0
        %527 = vmatpush1.msra.mxu0 0.0
        %528 = vmatprep.subr.mxu0 0.0
        %529 = vmatpush1.msra.mxu0 0.0
        %530 = vmatprep.subr.mxu0 0.0
        %531 = vmatpush1.msra.mxu0 0.0
        %532 = vmatprep.subr.mxu0 0.0
        %533 = vmatpush1.msra.mxu0 0.0
        %534 = vmatprep.subr.mxu0 0.0
        %535 = vmatpush1.msra.mxu0 0.0
        %536 = vmatprep.subr.mxu0 0.0
        %537 = vmatpush1.msra.mxu0 0.0
        %538 = vmatprep.subr.mxu0 0.0
        %539 = vmatpush1.msra.mxu0 0.0
        %540 = vmatprep.subr.mxu0 0.0
        %541 = vmatpush1.msra.mxu0 0.0
        %542 = vmatprep.subr.mxu0 0.0
        %543 = vmatpush1.msra.mxu0 0.0
        %544 = vmatprep.subr.mxu0 0.0
        %545 = vmatpush1.msra.mxu0 0.0
        %546 = vmatprep.subr.mxu0 0.0
        %547 = vmatpush1.msra.mxu0 0.0
        %548 = vmatprep.subr.mxu0 0.0
        %549 = vmatpush1.msra.mxu0 0.0
        %550 = vmatprep.subr.mxu0 0.0
        %551 = vmatpush1.msra.mxu0 0.0
        %552 = vmatprep.mubr.f32.mxu0 0.0
        %553 = vmatmul.mubr.f32.gmra.mrb[0].mxu0 %v464
        %v554 = vpop.f32.mrb[0].mxu0
        %v555 = vadd.f32 %v486, %v554
        %v556 = vpop.f32.mrb[0].mxu0
        %557 = vdwg.mxu0
        %v558 = vxor.u32 %v555, 2147483648
        %v559 = vmul.f32 %v558, 1.442695
        %v560 = vpow.pop %v559
        %v561 = vadd.f32 %v560, 1.0
        %v562 = vrcp.pop %v561
        %v563 = vmul.f32 1.0, %v562
        %565 = vrot.lane.b32.xlu0 %v360, 64
        %v566 = vpop.permute.xlu0 %565
        %v568 = vsel %vm366, %v361, %v566
        %v569 = vmul.f32 %v563, %v568
        %570 = vst [vmem:[%s359] sm:$0xff] %v569
        %s571 = sand.u32 %s193, 1
        %s572 = scalar_lea.sflag [#allocation4], %s571
        %s573 = sand.u32 %s193, 1
        %s574 = smul.addr %s573, 8
        %s575 = scalar_lea.vmem [#allocation10], %s574
        // Predicated region
        $region65: #{tpu_custom_call.1} parent=47 // pred_check
          %p576 = pneg %p203
        $region66: #{tpu_custom_call.1} parent=47 // pred_check_branch
          %578 = sbr.rel (%p576) target = $region68
        $region67: #{tpu_custom_call.1} parent=47 // pred_region
          %s580 = ssub.s32 128, 128
          %581 = vsyncadd %s572, %s580
          %s582 = smul.addr %s28, 128
          %s583 = scalar_lea.hbm %s7, %s582
          %s585 = sshll.u32 %s575, 4
          %s586 = int_to_ptr.vmem [resolvable:$true] %s585
          %588 = dma.vmem_to_hbm [thread:$0]  %s586, 128, %s583, %s572
        $region68: #{tpu_custom_call.1} parent=47 // pred_fallthru
          _
      $region48: #{tpu_custom_call.1} parent=5 // pred_fallthru
        _
      %p589 = scmp.le.s32.totalorder 2, %s23
      // Predicated region
      $region69: #{tpu_custom_call.1} parent=5 // pred_check
        %p590 = pneg %p589
      $region70: #{tpu_custom_call.1} parent=5 // pred_check_branch
        %592 = sbr.rel (%p590) target = $region72
      $region71: #{tpu_custom_call.1} parent=5 // pred_region
        %s593 = ssub.s32 %s23, 2
        // Predicated region
        $region73: #{tpu_custom_call.1} parent=71 // pred_check
          %p594 = pneg %p209
        $region74: #{tpu_custom_call.1} parent=71 // pred_check_branch
          %596 = sbr.rel (%p594) target = $region76
        $region75: #{tpu_custom_call.1} parent=71 // pred_region
          %s597 = sand.u32 %s194, 1
          %s598 = scalar_lea.sflag [#allocation4], %s597
          %s599 = sand.u32 %s194, 1
          %s600 = smul.addr %s599, 8
          %s601 = scalar_lea.vmem [#allocation10], %s600
          %602 = dma.done %s598, 128
        $region76: #{tpu_custom_call.1} parent=71 // pred_fallthru
          _
      $region72: #{tpu_custom_call.1} parent=5 // pred_fallthru
        _
    $region6: #{tpu_custom_call.1} parent=1 // loop_footer
      %s27 = sadd.s32 1, %s23
    $region7: #{tpu_custom_call.1} parent=1 // loop_footer_branch
      %22 = sbr.rel target = $region3
    $region8: #{tpu_custom_call.1} parent=1 // loop_exit
      _
    %603 = vsyncpa [#allocation3], 1
    %s604 = scalar_lea.sflag [#allocation3], 1
    %605 = vsyncpa %s604, 1
    %606 = vsyncpa [#allocation6], 1
    %s607 = scalar_lea.sflag [#allocation6], 1
    %608 = vsyncpa %s607, 1
    %609 = vsyncpa [#allocation9], 1
    %610 = vsyncpa [#allocation4], 1
    %s611 = scalar_lea.sflag [#allocation4], 1
    %612 = vsyncpa %s611, 1

</llo_original>
